<compile_context>
chip_gen: v5e
topology: v5e:2x2
jax: 0.10.0
libtpu: 0.0.40
codegen_flags: <defaults>
</compile_context>

<pallas_src>
import math

import jax
import jax.numpy as jnp
from jax import lax
from jax.experimental import pallas as pl
from jax.experimental.pallas import tpu as pltpu

IN_FEATURES = 1024
OUT_FEATURES = 1


def final_dense_kernel(x_ref, w_ref, b_ref, o_ref):
    # x_ref: (TB, 1024) VMEM    w_ref: (1, 1024) VMEM
    # b_ref: (1,) SMEM          o_ref: (1, TB) VMEM  (lane-dense output slab)
    acc = lax.dot_general(
        w_ref[...],
        x_ref[...],
        dimension_numbers=(((1,), (1,)), ((), ())),  # contract both on K
        preferred_element_type=jnp.float32,
    )  # (1, TB) f32
    o_ref[...] = (acc + b_ref[0]).astype(o_ref.dtype)


def final_dense(x, w, b, *, tb=1024):
    """y = x @ w.T + b, matching torch.nn.Linear(1024, 1).

    x: (..., 1024) float32
    w: (1, 1024)   float32  (torch layout: (out_features, in_features))
    b: (1,)        float32
    returns (..., 1) float32
    """
    assert x.shape[-1] == IN_FEATURES
    assert w.shape == (OUT_FEATURES, IN_FEATURES)
    assert b.shape == (OUT_FEATURES,)

    lead = x.shape[:-1]
    x2 = x.reshape(-1, IN_FEATURES)
    B = x2.shape[0]

    # Full-extent block when B is small (always legal).  When tiling, keep the
    # tile a multiple of 128 so the lane-dense (1, tb) output block satisfies
    # the (8, 128) constraint; only the final tail block is masked.
    if B <= tb:
        tb = B
    grid = (pl.cdiv(B, tb),)

    cost = pl.CostEstimate(
        flops=2 * B * IN_FEATURES,
        transcendentals=0,
        bytes_accessed=4 * (B * IN_FEATURES + IN_FEATURES + B + OUT_FEATURES),
    )

    y = pl.pallas_call(
        final_dense_kernel,
        out_shape=jax.ShapeDtypeStruct((OUT_FEATURES, B), jnp.float32),
        grid_spec=pltpu.PrefetchScalarGridSpec(
            num_scalar_prefetch=0,
            grid=grid,
            in_specs=[
                # x: tiled along batch, pipelined / double-buffered.
                pl.BlockSpec((tb, IN_FEATURES), lambda i: (i, 0)),
                # weight row: lane-dense, resident across all grid steps.
                pl.BlockSpec((OUT_FEATURES, IN_FEATURES), lambda i: (0, 0)),
                # bias: single scalar in SMEM.
                pl.BlockSpec(memory_space=pltpu.MemorySpace.SMEM),
            ],
            # lane-dense output: (1, tb) tiles of a (1, B) slab.
            out_specs=pl.BlockSpec((OUT_FEATURES, tb), lambda i: (0, i)),
        ),
        compiler_params=pltpu.CompilerParams(
            dimension_semantics=("parallel",),
        ),
        cost_estimate=cost,
    )(x2, w, b)

    # Layout plumbing only: (1, B) -> (..., 1), same element order.
    return y.reshape(*lead, OUT_FEATURES)


def init_params(key):
    # Deterministic init mimicking torch.nn.Linear default:
    # U(-1/sqrt(fan_in), 1/sqrt(fan_in)) for both weight and bias.
    kw, kb = jax.random.split(key)
    bound = 1.0 / math.sqrt(IN_FEATURES)
    w = jax.random.uniform(
        kw, (OUT_FEATURES, IN_FEATURES), jnp.float32, -bound, bound
    )  # torch layout (out, in)
    b = jax.random.uniform(kb, (OUT_FEATURES,), jnp.float32, -bound, bound)
    return w, b


if __name__ == "__main__":
    key = jax.random.PRNGKey(0)
    kx1, kx2, kp = jax.random.split(key, 3)

    w, b = init_params(kp)

    # 1) Small 3-D input (batch, seq, features) -> single full-extent block.
    x1 = jax.random.normal(kx1, (2, 8, IN_FEATURES), jnp.float32)
    y1 = final_dense(x1, w, b)
    jax.block_until_ready(y1)
    y1_ref = x1 @ w.T + b
    assert y1.shape == (2, 8, OUT_FEATURES)
    assert jnp.allclose(y1, y1_ref, atol=1e-5, rtol=1e-5)

    # 2) Tiled grid with a masked partial tail block: B=160, tb=128 -> grid=2.
    x2 = jax.random.normal(kx2, (160, IN_FEATURES), jnp.float32)
    y2 = final_dense(x2, w, b, tb=128)
    jax.block_until_ready(y2)
    y2_ref = x2 @ w.T + b
    assert y2.shape == (160, OUT_FEATURES)
    assert jnp.allclose(y2, y2_ref, atol=1e-5, rtol=1e-5)

    print("KERNEL_OK")
</pallas_src>

<mosaic_0001>
module attributes {stable_mosaic.version = 11 : i64} {
  func.func @final_dense_kernel(%arg0: i32, %arg1: memref<16x1024xf32, #tpu.memory_space<vmem>>, %arg2: memref<1x1024xf32, #tpu.memory_space<vmem>>, %arg3: memref<1xf32, #tpu.memory_space<smem>>, %arg4: memref<1x16xf32, #tpu.memory_space<vmem>>) attributes {dimension_semantics = [#tpu.dimension_semantics<parallel>], iteration_bounds = array<i64: 1>, scalar_prefetch = 0 : i64, scratch_operands = 0 : i64, tpu.core_type = #tpu.core_type<tc>, window_params = [{transform_indices = @transform_0, window_bounds = array<i64: 16, 1024>}, {pipeline_mode = #tpu.pipeline_mode<synchronous>, transform_indices = @transform_1, window_bounds = array<i64: 1, 1024>}, {transform_indices = @transform_2, window_bounds = array<i64: 1>}, {transform_indices = @transform_3, window_bounds = array<i64: 1, 16>}]} {
    %c0 = arith.constant 0 : index
    %c0_0 = arith.constant 0 : index
    %0 = vector.load %arg2[%c0, %c0_0] : memref<1x1024xf32, #tpu.memory_space<vmem>>, vector<1x1024xf32>
    %c0_1 = arith.constant 0 : index
    %c0_2 = arith.constant 0 : index
    %1 = vector.load %arg1[%c0_1, %c0_2] : memref<16x1024xf32, #tpu.memory_space<vmem>>, vector<16x1024xf32>
    %cst = arith.constant dense<0.000000e+00> : vector<1x16xf32>
    %2 = tpu.matmul %0, %1, %cst {dimension_numbers = #tpu.dot_dimension_numbers<[1], [1], [0], [0], [0, 0, 1, 0], [], []>} : vector<1x1024xf32>, vector<16x1024xf32>, vector<1x16xf32> -> vector<1x16xf32>
    %c0_3 = arith.constant 0 : index
    %3 = memref.load %arg3[%c0_3] : memref<1xf32, #tpu.memory_space<smem>>
    %4 = vector.broadcast %3 : f32 to vector<1x16xf32>
    %5 = arith.addf %2, %4 : vector<1x16xf32>
    %c0_4 = arith.constant 0 : index
    %c0_5 = arith.constant 0 : index
    %6 = vector.load %arg4[%c0_4, %c0_5] : memref<1x16xf32, #tpu.memory_space<vmem>>, vector<1x16xf32>
    tpu.vector_store %arg4[%c0_4, %c0_5], %5 {strides = array<i32>} : memref<1x16xf32, #tpu.memory_space<vmem>>, vector<1x16xf32>,
    return
  }
  func.func @transform_0(%arg0: i32) -> (i32, i32) {
    %c0_i32 = arith.constant 0 : i32
    %c0_i32_0 = arith.constant 0 : i32
    return %arg0, %c0_i32 : i32, i32
  }
  func.func @transform_1(%arg0: i32) -> (i32, i32) {
    %c0_i32 = arith.constant 0 : i32
    %c0_i32_0 = arith.constant 0 : i32
    %c0_i32_1 = arith.constant 0 : i32
    return %c0_i32, %c0_i32_0 : i32, i32
  }
  func.func @transform_2(%arg0: i32) -> i32 {
    %c0_i32 = arith.constant 0 : i32
    %c0_i32_0 = arith.constant 0 : i32
    return %c0_i32 : i32
  }
  func.func @transform_3(%arg0: i32) -> (i32, i32) {
    %c0_i32 = arith.constant 0 : i32
    %c0_i32_0 = arith.constant 0 : i32
    return %c0_i32, %arg0 : i32, i32
  }
}

</mosaic_0001>

<llo_original>
// kernel: tpu_custom_call.1
$region0: #{tpu_custom_call.1}
  #allocation0 [shape = 'u32[]', space=smem, size = 0x4, offset = 0x4, fixed_abs, tag = 'smem constant byte address 0x4 - core index']
  #allocation1 [shape = 'u32[72,128]{1,0:T(1,128)}', space=vmem, size = 0x9000, scoped, tag = 'internal scratch']
  #allocation2 [shape = 'f32[1]{0:T(128)S(6)}', space=smem, size = 0x200, scoped, tag = 'scoped memory for tpu_custom_call.1']
  %s0 = inlined_call_operand.hbm [shape: f32[16,1024], index: 0, kind: input, shape index: {}]
  %s1 = inlined_call_operand.hbm [shape: f32[1,1024], index: 1, kind: input, shape index: {}]
  %s2 = inlined_call_operand.<no memory space> [shape: f32[1], index: 2, kind: input, shape index: {}]
  %s3 = inlined_call_operand.hbm [shape: f32[1,16], index: 3, kind: output, shape index: {}]
  %s4 = sld [smem:[#allocation0]]
  $region30: #{tpu_custom_call.1} parent=0
    _
  %s6 = ssub.s32 1, %s4
  %s7 = scalar_select 0, %s6, %s4
  %8 = sst [smem:[#allocation2]] %s2
  $region1: #{tpu_custom_call.1} parent=0
    #allocation3 [shape = 'u8[65536]{0}', space=vmem, size = 0x10000, scoped, tag = 'input window, operand 0, single buffered']
    #allocation4 [shape = 's32[1]{0}', space=sflag, size = 0x4, scoped, tag = 'scoped memory for tpu_custom_call.1']
    #allocation5 [shape = 's32[1]{0}', space=sflag, size = 0x4, scoped, tag = 'scoped memory for tpu_custom_call.1']
    #allocation6 [shape = 'u8[4096]{0}', space=vmem, size = 0x1000, scoped, tag = 'input window, operand 1, single buffered']
    #allocation7 [shape = 's32[1]{0}', space=sflag, size = 0x4, scoped, tag = 'scoped memory for tpu_custom_call.1']
    #allocation8 [shape = 'u8[512]{0}', space=vmem, size = 0x400, scoped, tag = 'output window, operand 0, single buffered']
    %9 = vsyncpa [#allocation4], 0
    %10 = vsyncpa [#allocation7], 0
    %11 = vsyncpa [#allocation5], 0
    // Predicated region
    $region2: #{tpu_custom_call.1} parent=1 // pred_check
      _
    $region3: #{tpu_custom_call.1} parent=1 // pred_check_branch
      %13 = sbr.rel (0) target = $region5
    $region4: #{tpu_custom_call.1} parent=1 // pred_region
      %15 = vsyncadd [#allocation4], 0
      %s16 = sshll.u32 %s0, 4
      %s17 = int_to_ptr.hbm [resolvable:$true] %s16
      %s18 = sshll.u32 [#allocation3], 4
      %s19 = int_to_ptr.vmem [resolvable:$true] %s18
      %24 = dma.hbm_to_vmem [thread:$0]  %s17, 2048, %s19, [#allocation4], 1024, 1024, 64
    $region5: #{tpu_custom_call.1} parent=1 // pred_fallthru
      _
    // Predicated region
    $region6: #{tpu_custom_call.1} parent=1 // pred_check
      _
    $region7: #{tpu_custom_call.1} parent=1 // pred_check_branch
      %26 = sbr.rel (0) target = $region9
    $region8: #{tpu_custom_call.1} parent=1 // pred_region
      %28 = vsyncadd [#allocation7], 0
      %s30 = sshll.u32 %s1, 4
      %s31 = int_to_ptr.hbm [resolvable:$true] %s30
      %s32 = sshll.u32 [#allocation6], 4
      %s33 = int_to_ptr.vmem [resolvable:$true] %s32
      %35 = dma.hbm_to_vmem [thread:$0]  %s31, 128, %s33, [#allocation7]
    $region9: #{tpu_custom_call.1} parent=1 // pred_fallthru
      _
    // Predicated region
    $region10: #{tpu_custom_call.1} parent=1 // pred_check
      _
    $region11: #{tpu_custom_call.1} parent=1 // pred_check_branch
      %37 = sbr.rel (0) target = $region13
    $region12: #{tpu_custom_call.1} parent=1 // pred_region
      _
    $region13: #{tpu_custom_call.1} parent=1 // pred_fallthru
      _
    // Predicated region
    $region14: #{tpu_custom_call.1} parent=1 // pred_check
      _
    $region15: #{tpu_custom_call.1} parent=1 // pred_check_branch
      %39 = sbr.rel (0) target = $region17
    $region16: #{tpu_custom_call.1} parent=1 // pred_region
      %41 = dma.done [#allocation4], 2048
    $region17: #{tpu_custom_call.1} parent=1 // pred_fallthru
      _
    // Predicated region
    $region18: #{tpu_custom_call.1} parent=1 // pred_check
      _
    $region19: #{tpu_custom_call.1} parent=1 // pred_check_branch
      %43 = sbr.rel (0) target = $region21
    $region20: #{tpu_custom_call.1} parent=1 // pred_region
      %45 = dma.done [#allocation7], 128
    $region21: #{tpu_custom_call.1} parent=1 // pred_fallthru
      _
    %v46 = vld [vmem:[#allocation6] sm:$0xff]
    %v47 = vld [vmem:[#allocation3] sm:$0xff]
    %v48 = vld [vmem:[#allocation3 + $0x8] sm:$0xff]
    %v49 = vld [vmem:[#allocation3 + $0x10] sm:$0xff]
    %v50 = vld [vmem:[#allocation3 + $0x18] sm:$0xff]
    %v51 = vld [vmem:[#allocation3 + $0x20] sm:$0xff]
    %v52 = vld [vmem:[#allocation3 + $0x28] sm:$0xff]
    %v53 = vld [vmem:[#allocation3 + $0x30] sm:$0xff]
    %v54 = vld [vmem:[#allocation3 + $0x38] sm:$0xff]
    %v55 = vld [vmem:[#allocation3 + $0x40] sm:$0xff]
    %v56 = vld [vmem:[#allocation3 + $0x48] sm:$0xff]
    %v57 = vld [vmem:[#allocation3 + $0x50] sm:$0xff]
    %v58 = vld [vmem:[#allocation3 + $0x58] sm:$0xff]
    %v59 = vld [vmem:[#allocation3 + $0x60] sm:$0xff]
    %v60 = vld [vmem:[#allocation3 + $0x68] sm:$0xff]
    %v61 = vld [vmem:[#allocation3 + $0x70] sm:$0xff]
    %v62 = vld [vmem:[#allocation3 + $0x78] sm:$0xff]
    %s63 = sld [smem:[#allocation2]]
    %v64 = vstv %s63
    %v66 = vperm.slane %v46, 0
    %v67 = vperm.slane %v46, 1
    %v68 = vperm.slane %v46, 2
    %v69 = vperm.slane %v46, 3
    %v70 = vperm.slane %v46, 4
    %v71 = vperm.slane %v46, 5
    %v72 = vperm.slane %v46, 6
    %v73 = vperm.slane %v46, 7
    %82 = vmatpush.xpose.msra.mxu0 0.0
    %83 = vmatpush.xpose.msra.mxu0 0.0
    %84 = vmatpush.xpose.msra.mxu0 0.0
    %85 = vmatpush.xpose.msra.mxu0 0.0
    %86 = vmatpush.xpose.msra.mxu0 0.0
    %87 = vmatpush.xpose.msra.mxu0 0.0
    %88 = vmatpush.xpose.msra.mxu0 0.0
    %89 = vmatpush.xpose.msra.mxu0 0.0
    %90 = vmatpush.xpose.msra.mxu0 0.0
    %91 = vmatpush.xpose.msra.mxu0 0.0
    %92 = vmatpush.xpose.msra.mxu0 0.0
    %93 = vmatpush.xpose.msra.mxu0 0.0
    %94 = vmatpush.xpose.msra.mxu0 0.0
    %95 = vmatpush.xpose.msra.mxu0 0.0
    %96 = vmatpush.xpose.msra.mxu0 %v55
    %97 = vmatpush.xpose.msra.mxu0 %v47
    %98 = vmatmul.f32.gmra.mxu0 %v66
    %v99 = vpop.f32.mrf.mxu0
    %v100 = vadd.f32 %v64, %v99
    %101 = vdwg.mxu0
    %102 = vmatpush.xpose.msra.mxu0 0.0
    %103 = vmatpush.xpose.msra.mxu0 0.0
    %104 = vmatpush.xpose.msra.mxu0 0.0
    %105 = vmatpush.xpose.msra.mxu0 0.0
    %106 = vmatpush.xpose.msra.mxu0 0.0
    %107 = vmatpush.xpose.msra.mxu0 0.0
    %108 = vmatpush.xpose.msra.mxu0 0.0
    %109 = vmatpush.xpose.msra.mxu0 0.0
    %110 = vmatpush.xpose.msra.mxu0 0.0
    %111 = vmatpush.xpose.msra.mxu0 0.0
    %112 = vmatpush.xpose.msra.mxu0 0.0
    %113 = vmatpush.xpose.msra.mxu0 0.0
    %114 = vmatpush.xpose.msra.mxu0 0.0
    %115 = vmatpush.xpose.msra.mxu0 0.0
    %116 = vmatpush.xpose.msra.mxu0 %v56
    %117 = vmatpush.xpose.msra.mxu0 %v48
    %118 = vmatmul.f32.gmra.mxu0 %v67
    %v119 = vpop.f32.mrf.mxu0
    %v120 = vadd.f32 %v100, %v119
    %121 = vdwg.mxu0
    %122 = vmatpush.xpose.msra.mxu0 0.0
    %123 = vmatpush.xpose.msra.mxu0 0.0
    %124 = vmatpush.xpose.msra.mxu0 0.0
    %125 = vmatpush.xpose.msra.mxu0 0.0
    %126 = vmatpush.xpose.msra.mxu0 0.0
    %127 = vmatpush.xpose.msra.mxu0 0.0
    %128 = vmatpush.xpose.msra.mxu0 0.0
    %129 = vmatpush.xpose.msra.mxu0 0.0
    %130 = vmatpush.xpose.msra.mxu0 0.0
    %131 = vmatpush.xpose.msra.mxu0 0.0
    %132 = vmatpush.xpose.msra.mxu0 0.0
    %133 = vmatpush.xpose.msra.mxu0 0.0
    %134 = vmatpush.xpose.msra.mxu0 0.0
    %135 = vmatpush.xpose.msra.mxu0 0.0
    %136 = vmatpush.xpose.msra.mxu0 %v57
    %137 = vmatpush.xpose.msra.mxu0 %v49
    %138 = vmatmul.f32.gmra.mxu0 %v68
    %v139 = vpop.f32.mrf.mxu0
    %v140 = vadd.f32 %v120, %v139
    %141 = vdwg.mxu0
    %142 = vmatpush.xpose.msra.mxu0 0.0
    %143 = vmatpush.xpose.msra.mxu0 0.0
    %144 = vmatpush.xpose.msra.mxu0 0.0
    %145 = vmatpush.xpose.msra.mxu0 0.0
    %146 = vmatpush.xpose.msra.mxu0 0.0
    %147 = vmatpush.xpose.msra.mxu0 0.0
    %148 = vmatpush.xpose.msra.mxu0 0.0
    %149 = vmatpush.xpose.msra.mxu0 0.0
    %150 = vmatpush.xpose.msra.mxu0 0.0
    %151 = vmatpush.xpose.msra.mxu0 0.0
    %152 = vmatpush.xpose.msra.mxu0 0.0
    %153 = vmatpush.xpose.msra.mxu0 0.0
    %154 = vmatpush.xpose.msra.mxu0 0.0
    %155 = vmatpush.xpose.msra.mxu0 0.0
    %156 = vmatpush.xpose.msra.mxu0 %v58
    %157 = vmatpush.xpose.msra.mxu0 %v50
    %158 = vmatmul.f32.gmra.mxu0 %v69
    %v159 = vpop.f32.mrf.mxu0
    %v160 = vadd.f32 %v140, %v159
    %161 = vdwg.mxu0
    %162 = vmatpush.xpose.msra.mxu0 0.0
    %163 = vmatpush.xpose.msra.mxu0 0.0
    %164 = vmatpush.xpose.msra.mxu0 0.0
    %165 = vmatpush.xpose.msra.mxu0 0.0
    %166 = vmatpush.xpose.msra.mxu0 0.0
    %167 = vmatpush.xpose.msra.mxu0 0.0
    %168 = vmatpush.xpose.msra.mxu0 0.0
    %169 = vmatpush.xpose.msra.mxu0 0.0
    %170 = vmatpush.xpose.msra.mxu0 0.0
    %171 = vmatpush.xpose.msra.mxu0 0.0
    %172 = vmatpush.xpose.msra.mxu0 0.0
    %173 = vmatpush.xpose.msra.mxu0 0.0
    %174 = vmatpush.xpose.msra.mxu0 0.0
    %175 = vmatpush.xpose.msra.mxu0 0.0
    %176 = vmatpush.xpose.msra.mxu0 %v59
    %177 = vmatpush.xpose.msra.mxu0 %v51
    %178 = vmatmul.f32.gmra.mxu0 %v70
    %v179 = vpop.f32.mrf.mxu0
    %v180 = vadd.f32 %v160, %v179
    %181 = vdwg.mxu0
    %182 = vmatpush.xpose.msra.mxu0 0.0
    %183 = vmatpush.xpose.msra.mxu0 0.0
    %184 = vmatpush.xpose.msra.mxu0 0.0
    %185 = vmatpush.xpose.msra.mxu0 0.0
    %186 = vmatpush.xpose.msra.mxu0 0.0
    %187 = vmatpush.xpose.msra.mxu0 0.0
    %188 = vmatpush.xpose.msra.mxu0 0.0
    %189 = vmatpush.xpose.msra.mxu0 0.0
    %190 = vmatpush.xpose.msra.mxu0 0.0
    %191 = vmatpush.xpose.msra.mxu0 0.0
    %192 = vmatpush.xpose.msra.mxu0 0.0
    %193 = vmatpush.xpose.msra.mxu0 0.0
    %194 = vmatpush.xpose.msra.mxu0 0.0
    %195 = vmatpush.xpose.msra.mxu0 0.0
    %196 = vmatpush.xpose.msra.mxu0 %v60
    %197 = vmatpush.xpose.msra.mxu0 %v52
    %198 = vmatmul.f32.gmra.mxu0 %v71
    %v199 = vpop.f32.mrf.mxu0
    %v200 = vadd.f32 %v180, %v199
    %201 = vdwg.mxu0
    %202 = vmatpush.xpose.msra.mxu0 0.0
    %203 = vmatpush.xpose.msra.mxu0 0.0
    %204 = vmatpush.xpose.msra.mxu0 0.0
    %205 = vmatpush.xpose.msra.mxu0 0.0
    %206 = vmatpush.xpose.msra.mxu0 0.0
    %207 = vmatpush.xpose.msra.mxu0 0.0
    %208 = vmatpush.xpose.msra.mxu0 0.0
    %209 = vmatpush.xpose.msra.mxu0 0.0
    %210 = vmatpush.xpose.msra.mxu0 0.0
    %211 = vmatpush.xpose.msra.mxu0 0.0
    %212 = vmatpush.xpose.msra.mxu0 0.0
    %213 = vmatpush.xpose.msra.mxu0 0.0
    %214 = vmatpush.xpose.msra.mxu0 0.0
    %215 = vmatpush.xpose.msra.mxu0 0.0
    %216 = vmatpush.xpose.msra.mxu0 %v61
    %217 = vmatpush.xpose.msra.mxu0 %v53
    %218 = vmatmul.f32.gmra.mxu0 %v72
    %v219 = vpop.f32.mrf.mxu0
    %v220 = vadd.f32 %v200, %v219
    %221 = vdwg.mxu0
    %222 = vmatpush.xpose.msra.mxu0 0.0
    %223 = vmatpush.xpose.msra.mxu0 0.0
    %224 = vmatpush.xpose.msra.mxu0 0.0
    %225 = vmatpush.xpose.msra.mxu0 0.0
    %226 = vmatpush.xpose.msra.mxu0 0.0
    %227 = vmatpush.xpose.msra.mxu0 0.0
    %228 = vmatpush.xpose.msra.mxu0 0.0
    %229 = vmatpush.xpose.msra.mxu0 0.0
    %230 = vmatpush.xpose.msra.mxu0 0.0
    %231 = vmatpush.xpose.msra.mxu0 0.0
    %232 = vmatpush.xpose.msra.mxu0 0.0
    %233 = vmatpush.xpose.msra.mxu0 0.0
    %234 = vmatpush.xpose.msra.mxu0 0.0
    %235 = vmatpush.xpose.msra.mxu0 0.0
    %236 = vmatpush.xpose.msra.mxu0 %v62
    %237 = vmatpush.xpose.msra.mxu0 %v54
    %238 = vmatmul.f32.gmra.mxu0 %v73
    %v239 = vpop.f32.mrf.mxu0
    %v240 = vadd.f32 %v220, %v239
    %241 = vdwg.mxu0
    %vm242 = vcmask 122880
    %243 = vst.msk [vmem:[#allocation8] sm:$0x1] %vm242, %v240
    // Predicated region
    $region22: #{tpu_custom_call.1} parent=1 // pred_check
      _
    $region23: #{tpu_custom_call.1} parent=1 // pred_check_branch
      %245 = sbr.rel (0) target = $region25
    $region24: #{tpu_custom_call.1} parent=1 // pred_region
      %247 = vsyncadd [#allocation5], 0
      %s249 = sshll.u32 [#allocation8], 4
      %s250 = int_to_ptr.vmem [resolvable:$true] %s249
      %s251 = sshll.u32 %s3, 4
      %s252 = int_to_ptr.hbm [resolvable:$true] %s251
      %254 = dma.vmem_to_hbm [thread:$0]  %s250, 16, %s252, [#allocation5]
    $region25: #{tpu_custom_call.1} parent=1 // pred_fallthru
      _
    // Predicated region
    $region26: #{tpu_custom_call.1} parent=1 // pred_check
      _
    $region27: #{tpu_custom_call.1} parent=1 // pred_check_branch
      %256 = sbr.rel (0) target = $region29
    $region28: #{tpu_custom_call.1} parent=1 // pred_region
      %258 = dma.done [#allocation5], 16
    $region29: #{tpu_custom_call.1} parent=1 // pred_fallthru
      _
    %259 = vsyncpa [#allocation4], 1
    %260 = vsyncpa [#allocation7], 1
    %261 = vsyncpa [#allocation5], 1

</llo_original>
